<compile_context>
chip_gen: v7x
topology: tpu7x:2x2x1
jax: 0.10.0
libtpu: 0.0.40
codegen_flags: <defaults>
</compile_context>

<pallas_src>
import functools

import jax
import jax.numpy as jnp
from jax import lax
from jax.experimental import pallas as pl
from jax.experimental.pallas import tpu as pltpu


def _frame_bce_kernel(len_ref, prob_ref, tar_ref, out_ref, *, ndim, timesteps):
    j = pl.program_id(1)                              # feature-tile index

    p = prob_ref[...].astype(jnp.float32)             # (TB, TN)
    t = tar_ref[...].astype(jnp.float32)              # (TB, TN)
    lens = len_ref[...]                               # (TB, 1) int32

    tb, tn = p.shape
    # Flat column index within the (T*D)-wide row.
    # mask[b, c] = (c // D < length[b])  <=>  c < min(length[b], T) * D
    # The min() also kills columns c >= T*D, i.e. the out-of-bounds part of a
    # ragged boundary tile (no input padding is done in the wrapper).
    col = j * tn + lax.broadcasted_iota(jnp.int32, (tb, tn), 1)
    bound = jnp.minimum(lens, timesteps) * ndim       # (TB, 1) int32

    # PyTorch binary_cross_entropy clamps log terms at -100.
    log_p = jnp.maximum(jnp.log(p), -100.0)
    log_1mp = jnp.maximum(jnp.log(1.0 - p), -100.0)
    # t*log(p) + (1-t)*log(1-p), negation hoisted to the tile-scalar below.
    ll = log_1mp + t * (log_p - log_1mp)
    # Select, don't multiply: boundary-block garbage may be NaN/Inf and
    # NaN * 0 == NaN would poison the sum.
    ll = jnp.where(col < bound, ll, 0.0)
    partial = -jnp.sum(ll)                            # one tile-wide reduce

    # Lane-dense (8,128) store: partial at [0,0], zeros elsewhere, so the
    # wrapper can do a dense sum over all partial blocks.
    rows_o = lax.broadcasted_iota(jnp.int32, out_ref.shape, out_ref.ndim - 2)
    cols_o = lax.broadcasted_iota(jnp.int32, out_ref.shape, out_ref.ndim - 1)
    out_ref[...] = jnp.where((rows_o + cols_o) == 0, partial, 0.0)


def frame_bce_loss(frame_prob, tar_time, length):
    """frame_prob, tar_time: (B, T, D) float; length: (B,) int -> scalar f32."""
    B, T, D = frame_prob.shape
    N = T * D
    length = length.astype(jnp.int32)

    # Denominator = mask.sum() = sum_b min(length_b, T); no kernel work needed.
    denom = jnp.sum(jnp.minimum(length, T)).astype(jnp.float32)

    # Lane-dense flatten (free for contiguous row-major layout); keep native
    # dtype — the kernel up-casts per tile.
    prob2 = frame_prob.reshape(B, N)
    tar2 = tar_time.reshape(B, N)
    elem_bytes = prob2.dtype.itemsize

    # --- tile-size selection: ~2 MiB per input tile -------------------------
    # 2 inputs x 2 pipeline buffers x 2 MiB = 8 MiB of pipeline VMEM; plenty of
    # headroom under the 32 MiB limit below for element-wise temporaries.
    MAX_TILE_BYTES = 2 << 20
    bytes_per_row = N * elem_bytes
    b_ceil8 = ((B + 7) // 8) * 8

    if 8 * bytes_per_row <= MAX_TILE_BYTES:
        # Full rows fit: block several batch rows per step, no feature tiling.
        tn = N
        tb = max(8, (MAX_TILE_BYTES // bytes_per_row) // 8 * 8)
    else:
        # A single 8-row slab is already big: tile the flattened feature axis.
        tb = 8
        tn = max(128, (MAX_TILE_BYTES // (8 * elem_bytes)) // 128 * 128)
        tn = min(tn, ((N + 127) // 128) * 128)
    tb = min(tb, b_ceil8)

    grid_b = pl.cdiv(B, tb)
    grid_n = pl.cdiv(N, tn)

    # --- megacore (v7x): never collapse to a single grid block --------------
    if grid_b * grid_n < 2:
        if B > 8:                                      # split the batch axis
            tb = max(8, (pl.cdiv(B, 2) + 7) // 8 * 8)
            grid_b = pl.cdiv(B, tb)
        elif N > 128:                                  # split the feature axis
            tn = max(128, (N // 2) // 128 * 128)
            grid_n = pl.cdiv(N, tn)

    # Pad ONLY the tiny length vector; padded rows get length 0 -> masked out.
    # The big inputs are NOT padded: boundary blocks are handled in-kernel.
    b_pad = grid_b * tb
    length_p = jnp.pad(length, (0, b_pad - B)) if b_pad > B else length
    len_col = length_p.reshape(b_pad, 1)

    grid_spec = pltpu.PrefetchScalarGridSpec(
        num_scalar_prefetch=0,
        grid=(grid_b, grid_n),
        in_specs=[
            pl.BlockSpec((tb, 1), lambda i, j: (i, 0)),    # per-row lengths
            pl.BlockSpec((tb, tn), lambda i, j: (i, j)),   # frame_prob tile
            pl.BlockSpec((tb, tn), lambda i, j: (i, j)),   # tar_time tile
        ],
        out_specs=pl.BlockSpec((1, 1, 8, 128), lambda i, j: (i, j, 0, 0)),
    )

    partials = pl.pallas_call(
        functools.partial(_frame_bce_kernel, ndim=D, timesteps=T),
        grid_spec=grid_spec,
        out_shape=jax.ShapeDtypeStruct((grid_b, grid_n, 8, 128), jnp.float32),
        compiler_params=pltpu.CompilerParams(
            dimension_semantics=("parallel", "parallel"),
            vmem_limit_bytes=32 << 20,
        ),
        cost_estimate=pl.CostEstimate(
            flops=8 * B * T * D,
            transcendentals=2 * B * T * D,
            bytes_accessed=2 * B * T * D * elem_bytes
            + b_pad * 4
            + grid_b * grid_n * 8 * 128 * 4,
        ),
    )(len_col, prob2, tar2)

    bce_sum = jnp.sum(partials)                        # dense reduce, no gather
    return bce_sum / denom


def _reference(frame_prob, tar_time, length):
    """Pure-JAX reference mirroring the PyTorch forward."""
    B, T, D = tar_time.shape
    idxs = jnp.broadcast_to(jnp.arange(T)[None, :], (B, T))
    mask = (idxs < length[:, None]).astype(jnp.float32)
    fp = frame_prob.astype(jnp.float32)
    tt = tar_time.astype(jnp.float32)
    log_p = jnp.maximum(jnp.log(fp), -100.0)
    log_1mp = jnp.maximum(jnp.log(1.0 - fp), -100.0)
    bce = -(tt * log_p + (1.0 - tt) * log_1mp)
    return jnp.sum(bce * mask[..., None]) / jnp.sum(mask)


if __name__ == "__main__":
    key = jax.random.PRNGKey(0)

    # Case 1: small canonical shape.
    B, T, D = 2, 8, 32
    k1, k2, _ = jax.random.split(key, 3)
    frame_prob = jax.nn.sigmoid(jax.random.normal(k1, (B, T, D), dtype=jnp.float32))
    tar_time = jax.random.bernoulli(k2, p=0.3, shape=(B, T, D)).astype(jnp.float32)
    length = jnp.array([5, 8], dtype=jnp.int32)

    loss = jax.block_until_ready(frame_bce_loss(frame_prob, tar_time, length))
    ref = _reference(frame_prob, tar_time, length)
    assert jnp.allclose(loss, ref, rtol=1e-5, atol=1e-5), (loss, ref)

    # Case 2: exercises batch boundary blocks, non-128-multiple T*D,
    # length > T and length == 0.
    B2, T2, D2 = 5, 12, 20
    k3, k4 = jax.random.split(k1)
    frame_prob2 = jax.nn.sigmoid(jax.random.normal(k3, (B2, T2, D2), dtype=jnp.float32))
    tar_time2 = jax.random.bernoulli(k4, p=0.4, shape=(B2, T2, D2)).astype(jnp.float32)
    length2 = jnp.array([0, 3, 12, 20, 7], dtype=jnp.int32)

    loss2 = jax.block_until_ready(frame_bce_loss(frame_prob2, tar_time2, length2))
    ref2 = _reference(frame_prob2, tar_time2, length2)
    assert jnp.allclose(loss2, ref2, rtol=1e-5, atol=1e-5), (loss2, ref2)

    print("KERNEL_OK")
</pallas_src>

<mosaic_0001>
module attributes {stable_mosaic.version = 11 : i64} {
  func.func @_frame_bce_kernel(%arg0: i32, %arg1: i32, %arg2: memref<8x1xi32, #tpu.memory_space<vmem>>, %arg3: memref<8x128xf32, #tpu.memory_space<vmem>>, %arg4: memref<8x128xf32, #tpu.memory_space<vmem>>, %arg5: memref<1x1x8x128xf32, #tpu.memory_space<vmem>>) attributes {dimension_semantics = [#tpu.dimension_semantics<parallel>, #tpu.dimension_semantics<parallel>], iteration_bounds = array<i64: 1, 2>, scalar_prefetch = 0 : i64, scratch_operands = 0 : i64, tpu.core_type = #tpu.core_type<tc>, window_params = [{transform_indices = @transform_0, window_bounds = array<i64: 8, 1>}, {transform_indices = @transform_1, window_bounds = array<i64: 8, 128>}, {transform_indices = @transform_2, window_bounds = array<i64: 8, 128>}, {transform_indices = @transform_3, window_bounds = array<i64: 1, 1, 8, 128>}]} {
    %c0 = arith.constant 0 : index
    %c0_0 = arith.constant 0 : index
    %0 = vector.load %arg3[%c0, %c0_0] : memref<8x128xf32, #tpu.memory_space<vmem>>, vector<8x128xf32>
    %c0_1 = arith.constant 0 : index
    %c0_2 = arith.constant 0 : index
    %1 = vector.load %arg4[%c0_1, %c0_2] : memref<8x128xf32, #tpu.memory_space<vmem>>, vector<8x128xf32>
    %c0_3 = arith.constant 0 : index
    %c0_4 = arith.constant 0 : index
    %2 = vector.load %arg2[%c0_3, %c0_4] : memref<8x1xi32, #tpu.memory_space<vmem>>, vector<8x1xi32>
    %c128_i32 = arith.constant 128 : i32
    %3 = arith.muli %arg1, %c128_i32 : i32
    %4 = tpu.iota {dimensions = array<i32: 1>} : vector<8x128xi32>
    %5 = vector.broadcast %3 : i32 to vector<8x128xi32>
    %6 = arith.addi %5, %4 : vector<8x128xi32>
    %c8_i32 = arith.constant 8 : i32
    %7 = vector.broadcast %c8_i32 : i32 to vector<8x1xi32>
    %8 = arith.minsi %2, %7 : vector<8x1xi32>
    %c32_i32 = arith.constant 32 : i32
    %9 = vector.broadcast %c32_i32 : i32 to vector<8x1xi32>
    %10 = arith.muli %8, %9 : vector<8x1xi32>
    %11 = math.log %0 : vector<8x128xf32>
    %cst = arith.constant -1.000000e+02 : f32
    %12 = vector.broadcast %cst : f32 to vector<8x128xf32>
    %13 = arith.maximumf %11, %12 : vector<8x128xf32>
    %cst_5 = arith.constant 1.000000e+00 : f32
    %14 = vector.broadcast %cst_5 : f32 to vector<8x128xf32>
    %15 = arith.subf %14, %0 : vector<8x128xf32>
    %16 = math.log %15 : vector<8x128xf32>
    %cst_6 = arith.constant -1.000000e+02 : f32
    %17 = vector.broadcast %cst_6 : f32 to vector<8x128xf32>
    %18 = arith.maximumf %16, %17 : vector<8x128xf32>
    %19 = arith.subf %13, %18 : vector<8x128xf32>
    %20 = arith.mulf %1, %19 : vector<8x128xf32>
    %21 = arith.addf %18, %20 : vector<8x128xf32>
    %22 = vector.broadcast %10 : vector<8x1xi32> to vector<8x128xi32>
    %23 = arith.cmpi slt, %6, %22 : vector<8x128xi32>
    %cst_7 = arith.constant 0.000000e+00 : f32
    %24 = vector.broadcast %cst_7 : f32 to vector<8x128xf32>
    %25 = arith.select %23, %21, %24 : vector<8x128xi1>, vector<8x128xf32>
    %26 = vector.shape_cast %25 : vector<8x128xf32> to vector<1x8x128xf32>
    %cst_8 = arith.constant dense<0.000000e+00> : vector<1xf32>
    %27 = vector.multi_reduction <add>, %26, %cst_8 [1, 2] : vector<1x8x128xf32> to vector<1xf32>
    %28 = vector.shape_cast %27 : vector<1xf32> to vector<1x1x1xf32>
    %29 = vector.extract %28[0, 0, 0] : f32 from vector<1x1x1xf32>
    %cst_9 = arith.constant 0.000000e+00 : f32
    %30 = arith.subf %cst_9, %29 : f32
    %31 = tpu.iota {dimensions = array<i32: 2>} : vector<1x1x8x128xi32>
    %32 = tpu.iota {dimensions = array<i32: 3>} : vector<1x1x8x128xi32>
    %33 = arith.addi %31, %32 : vector<1x1x8x128xi32>
    %c0_i32 = arith.constant 0 : i32
    %34 = vector.broadcast %c0_i32 : i32 to vector<1x1x8x128xi32>
    %35 = arith.cmpi eq, %33, %34 : vector<1x1x8x128xi32>
    %cst_10 = arith.constant 0.000000e+00 : f32
    %36 = vector.broadcast %30 : f32 to vector<1x1x8x128xf32>
    %37 = vector.broadcast %cst_10 : f32 to vector<1x1x8x128xf32>
    %38 = arith.select %35, %36, %37 : vector<1x1x8x128xi1>, vector<1x1x8x128xf32>
    %c0_11 = arith.constant 0 : index
    %c0_12 = arith.constant 0 : index
    %c0_13 = arith.constant 0 : index
    %c0_14 = arith.constant 0 : index
    %39 = vector.load %arg5[%c0_11, %c0_12, %c0_13, %c0_14] : memref<1x1x8x128xf32, #tpu.memory_space<vmem>>, vector<1x1x8x128xf32>
    tpu.vector_store %arg5[%c0_11, %c0_12, %c0_13, %c0_14], %38 {strides = array<i32>} : memref<1x1x8x128xf32, #tpu.memory_space<vmem>>, vector<1x1x8x128xf32>,
    return
  }
  func.func @transform_0(%arg0: i32, %arg1: i32) -> (i32, i32) {
    %c0_i32 = arith.constant 0 : i32
    %c0_i32_0 = arith.constant 0 : i32
    return %arg0, %c0_i32 : i32, i32
  }
  func.func @transform_1(%arg0: i32, %arg1: i32) -> (i32, i32) {
    %c0_i32 = arith.constant 0 : i32
    return %arg0, %arg1 : i32, i32
  }
  func.func @transform_2(%arg0: i32, %arg1: i32) -> (i32, i32) {
    %c0_i32 = arith.constant 0 : i32
    return %arg0, %arg1 : i32, i32
  }
  func.func @transform_3(%arg0: i32, %arg1: i32) -> (i32, i32, i32, i32) {
    %c0_i32 = arith.constant 0 : i32
    %c0_i32_0 = arith.constant 0 : i32
    %c0_i32_1 = arith.constant 0 : i32
    return %arg0, %arg1, %c0_i32, %c0_i32_0 : i32, i32, i32, i32
  }
}

</mosaic_0001>

<llo_original>
// kernel: tpu_custom_call.1
$region0: #{tpu_custom_call.1}
  #allocation0 [shape = 'u32[]', space=smem, size = 0x4, offset = 0x4, fixed_abs, tag = 'smem constant byte address 0x4 - core index']
  #allocation1 [shape = 'u32[144,128]{1,0:T(1,128)}', space=vmem, size = 0x12000, scoped, tag = 'internal scratch']
  %s0 = inlined_call_operand.vmem [shape: s32[8,1], index: 0, kind: input, shape index: {}]
  %s1 = inlined_call_operand.vmem [shape: f32[2,256], index: 1, kind: input, shape index: {}]
  %s2 = inlined_call_operand.vmem [shape: f32[2,256], index: 2, kind: input, shape index: {}]
  %s3 = inlined_call_operand.hbm [shape: f32[1,2,8,128], index: 3, kind: output, shape index: {}]
  %s4 = sld [smem:[#allocation0]]
  $region113: #{tpu_custom_call.1} parent=0
    _
  %s6 = ssub.s32 1, %s4
  %s7 = scalar_select 0, %s6, %s4
  $region1: #{tpu_custom_call.1} parent=0
    #allocation2 [shape = 'u8[8192]{0}', space=vmem, size = 0x2000, scoped, tag = 'input window, operand 1']
    #allocation3 [shape = 'u8[8192]{0}', space=vmem, size = 0x2000, scoped, tag = 'input window, operand 2']
    #allocation4 [shape = 'u8[8192]{0}', space=vmem, size = 0x2000, scoped, tag = 'output window, operand 0']
    #allocation5 [shape = 's32[2]{0}', space=sflag, size = 0x8, scoped, tag = 'scoped memory for tpu_custom_call.1']
    %8 = vsyncpa [#allocation5], 0
    %s9 = scalar_lea.sflag [#allocation5], 1
    %10 = vsyncpa %s9, 0
    loop: start=0, step=1, limit=4
    $region2: #{tpu_custom_call.1} parent=1 // loop_pre_header
      _
    $region3: #{tpu_custom_call.1} parent=1 // loop_header
      %s12 = sphi 0, %s16
      %p13 = scmp.ge.s32.totalorder %s12, 4
      %s19 = sphi 0, %s31
      %s20 = sphi 0, %s27
      %s21 = sphi 0, %s19
      %s22 = sphi 0, %s20
      %s23 = sphi 0, %s21
      %s24 = sphi 0, %s22
      %s34 = sphi 0, %s36
      %s37 = sphi 0, %s34
      %s38 = sphi 0, %s37
      %s54 = sphi 0, %s38
      %s62 = sphi 0, %s64
      %s65 = sphi 0, %s62
      %s66 = sphi 0, %s65
      %s82 = sphi 0, %s66
      %s90 = sphi 0, %s92
      %s93 = sphi 0, %s90
      %s94 = sphi 0, %s93
      %s110 = sphi 0, %s94
      %s118 = sphi 0, %s120
      %s121 = sphi 0, %s118
      %s122 = sphi 0, %s121
      %s138 = sphi 0, %s122
    $region4: #{tpu_custom_call.1} parent=1 // loop_header_branch
      %15 = sbr.rel (%p13) target = $region8
    $region5: #{tpu_custom_call.1} parent=1 // loop_body
      %s17 = ssub.s32 %s12, 1
      %s18 = ssub.s32 %s12, 2
      %s25 = sadd.s32 1, %s20
      %p26 = scmp.ge.s32.totalorder %s25, 2
      %s27 = scalar_select %p26, 0, %s25
      %s28 = sadd.s32 1, %s19
      %s29 = scalar_select %p26, %s28, %s19
      %p30 = scmp.ge.s32.totalorder %s29, 1
      %s31 = scalar_select %p30, 0, %s29
      %s32 = ssub.s32 %s19, %s31
      %p33 = scmp.eq.s32.totalorder %s32, 0
      %s35 = sadd.s32 %s34, 1
      %s36 = scalar_select %p33, %s34, %s35
      %p39 = pneg %p33
      %p40 = scmp.eq.s32.totalorder %s12, 1
      %p41 = por %p39, %p40
      %p42 = scmp.ne.s32.totalorder %s34, %s37
      %p43 = scmp.eq.s32.totalorder %s12, 0
      %p44 = por %p42, %p43
      %p45 = scmp.ne.s32.totalorder %s34, %s37
      %p46 = scmp.eq.s32.totalorder %s17, 1
      %p47 = por %p45, %p46
      %p48 = scmp.ne.s32.totalorder %s37, %s38
      %p49 = scmp.eq.s32.totalorder %s17, 0
      %p50 = por %p48, %p49
      %p51 = scmp.ne.s32.totalorder %s37, %s38
      %p52 = scmp.eq.s32.totalorder %s18, 1
      %p53 = por %p51, %p52
      %p55 = scmp.ne.s32.totalorder %s38, %s54
      %p56 = scmp.eq.s32.totalorder %s18, 0
      %p57 = por %p55, %p56
      %s58 = ssub.s32 %s19, %s31
      %s59 = ssub.s32 %s20, %s27
      %s60 = sor.u32 %s58, %s59
      %p61 = scmp.eq.s32.totalorder %s60, 0
      %s63 = sadd.s32 %s62, 1
      %s64 = scalar_select %p61, %s62, %s63
      %p67 = pneg %p61
      %p68 = scmp.eq.s32.totalorder %s12, 1
      %p69 = por %p67, %p68
      %p70 = scmp.ne.s32.totalorder %s62, %s65
      %p71 = scmp.eq.s32.totalorder %s12, 0
      %p72 = por %p70, %p71
      %p73 = scmp.ne.s32.totalorder %s62, %s65
      %p74 = scmp.eq.s32.totalorder %s17, 1
      %p75 = por %p73, %p74
      %p76 = scmp.ne.s32.totalorder %s65, %s66
      %p77 = scmp.eq.s32.totalorder %s17, 0
      %p78 = por %p76, %p77
      %p79 = scmp.ne.s32.totalorder %s65, %s66
      %p80 = scmp.eq.s32.totalorder %s18, 1
      %p81 = por %p79, %p80
      %p83 = scmp.ne.s32.totalorder %s66, %s82
      %p84 = scmp.eq.s32.totalorder %s18, 0
      %p85 = por %p83, %p84
      %s86 = ssub.s32 %s19, %s31
      %s87 = ssub.s32 %s20, %s27
      %s88 = sor.u32 %s86, %s87
      %p89 = scmp.eq.s32.totalorder %s88, 0
      %s91 = sadd.s32 %s90, 1
      %s92 = scalar_select %p89, %s90, %s91
      %p95 = pneg %p89
      %p96 = scmp.eq.s32.totalorder %s12, 1
      %p97 = por %p95, %p96
      %p98 = scmp.ne.s32.totalorder %s90, %s93
      %p99 = scmp.eq.s32.totalorder %s12, 0
      %p100 = por %p98, %p99
      %p101 = scmp.ne.s32.totalorder %s90, %s93
      %p102 = scmp.eq.s32.totalorder %s17, 1
      %p103 = por %p101, %p102
      %p104 = scmp.ne.s32.totalorder %s93, %s94
      %p105 = scmp.eq.s32.totalorder %s17, 0
      %p106 = por %p104, %p105
      %p107 = scmp.ne.s32.totalorder %s93, %s94
      %p108 = scmp.eq.s32.totalorder %s18, 1
      %p109 = por %p107, %p108
      %p111 = scmp.ne.s32.totalorder %s94, %s110
      %p112 = scmp.eq.s32.totalorder %s18, 0
      %p113 = por %p111, %p112
      %s114 = ssub.s32 %s19, %s31
      %s115 = ssub.s32 %s20, %s27
      %s116 = sor.u32 %s114, %s115
      %p117 = scmp.eq.s32.totalorder %s116, 0
      %s119 = sadd.s32 %s118, 1
      %s120 = scalar_select %p117, %s118, %s119
      %p123 = pneg %p117
      %p124 = scmp.eq.s32.totalorder %s12, 1
      %p125 = por %p123, %p124
      %p126 = scmp.ne.s32.totalorder %s118, %s121
      %p127 = scmp.eq.s32.totalorder %s12, 0
      %p128 = por %p126, %p127
      %p129 = scmp.ne.s32.totalorder %s118, %s121
      %p130 = scmp.eq.s32.totalorder %s17, 1
      %p131 = por %p129, %p130
      %p132 = scmp.ne.s32.totalorder %s121, %s122
      %p133 = scmp.eq.s32.totalorder %s17, 0
      %p134 = por %p132, %p133
      %p135 = scmp.ne.s32.totalorder %s121, %s122
      %p136 = scmp.eq.s32.totalorder %s18, 1
      %p137 = por %p135, %p136
      %p139 = scmp.ne.s32.totalorder %s122, %s138
      %p140 = scmp.eq.s32.totalorder %s18, 0
      %p141 = por %p139, %p140
      %p142 = scmp.le.s32.totalorder 1, %s12
      %p143 = scmp.lt.s32.totalorder %s12, 3
      %p144 = pnand %p142, %p143
      %p145 = pneg %p144
      // Predicated region
      $region9: #{tpu_custom_call.1} parent=5 // pred_check
        _
      $region10: #{tpu_custom_call.1} parent=5 // pred_check_branch
        %147 = sbr.rel (%p144) target = $region12
      $region11: #{tpu_custom_call.1} parent=5 // pred_region
        %s148 = ssub.s32 %s12, 1
        // Predicated region
        $region13: #{tpu_custom_call.1} parent=11 // pred_check
          %p149 = pneg %p50
        $region14: #{tpu_custom_call.1} parent=11 // pred_check_branch
          %151 = sbr.rel (%p149) target = $region16
        $region15: #{tpu_custom_call.1} parent=11 // pred_region
          %p152 = scmp.lt.s32.totalorder %s21, 0
          %s153 = scalar_select %p152, %s21, 0
          %s154 = smul.addr %s153, 8
          %s155 = scalar_lea.vmem %s0, %s154
        $region16: #{tpu_custom_call.1} parent=11 // pred_fallthru
          _
      $region12: #{tpu_custom_call.1} parent=5 // pred_fallthru
        _
      %p156 = scmp.lt.s32.totalorder %s12, 2
      // Predicated region
      $region17: #{tpu_custom_call.1} parent=5 // pred_check
        %p157 = pneg %p156
      $region18: #{tpu_custom_call.1} parent=5 // pred_check_branch
        %159 = sbr.rel (%p157) target = $region20
      $region19: #{tpu_custom_call.1} parent=5 // pred_region
        // Predicated region
        $region21: #{tpu_custom_call.1} parent=19 // pred_check
          %p160 = pneg %p72
        $region22: #{tpu_custom_call.1} parent=19 // pred_check_branch
          %162 = sbr.rel (%p160) target = $region24
        $region23: #{tpu_custom_call.1} parent=19 // pred_region
          %s163 = sand.u32 %s62, 1
          %s164 = sand.u32 %s62, 1
          %s165 = smul.addr %s164, 8
          %s166 = scalar_lea.vmem [#allocation2], %s165
          %s167 = smul.u32 4, %s19
          %s168 = ssub.s32 1, %s167
          %s169 = smul.u32 32, %s168
          %p170 = scmp.ne.s32.totalorder 0, %s169
          %s171 = smul.addr %s167, 2
          %s172 = sadd.s32 %s20, %s171
          %s173 = smul.addr %s172, 2
          %s174 = scalar_lea.vmem %s1, %s173
          // Predicated region
          $region25: #{tpu_custom_call.1} parent=23 // pred_check
            %p175 = pneg %p170
          $region26: #{tpu_custom_call.1} parent=23 // pred_check_branch
            %177 = sbr.rel (%p175) target = $region28
          $region27: #{tpu_custom_call.1} parent=23 // pred_region
            // Predicated region
            $region29: #{tpu_custom_call.1} parent=27 // pred_check
              _
            $region30: #{tpu_custom_call.1} parent=27 // pred_check_branch
              %179 = sbr.rel target = $region32
            $region31: #{tpu_custom_call.1} parent=27 // pred_region
              // Predicated region
              $region44: #{tpu_custom_call.1} parent=31 // pred_check
                _
              $region45: #{tpu_custom_call.1} parent=31 // pred_check_branch
                %202 = sbr.rel (0) target = $region47
              $region46: #{tpu_custom_call.1} parent=31 // pred_region
                // While loop
                $region48: #{tpu_custom_call.1} parent=46 // loop_pre_header
                  _
                $region49: #{tpu_custom_call.1} parent=46 // loop_header
                  %s205 = sphi 0, %s207
                  %p206 = scmp.ge.s32.totalorder %s205, %s168
                  %s210 = sphi 0, %s217
                  %s211 = sphi %s174, %s220
                  %s212 = sphi %s166, %s221
                $region50: #{tpu_custom_call.1} parent=46 // loop_header_branch
                  %209 = sbr.rel (%p206) target = $region54
                $region51: #{tpu_custom_call.1} parent=46 // loop_body
                  %v213 = vld [vmem:[%s211] sm:$0x3]
                  %214 = vst [vmem:[%s212] sm:$0x3] %v213
                  %s215 = sadd.s32 1, %s210
                  %p216 = scmp.ge.s32.totalorder %s215, %s168
                  %s217 = scalar_select %p216, 0, %s215
                  %s218 = smul.u32 %s217, 4
                  %s219 = smul.u32 %s217, 2
                  %s220 = scalar_lea.vmem %s174, %s218
                  %s221 = scalar_lea.vmem %s166, %s219 [#allocation2]
                $region52: #{tpu_custom_call.1} parent=46 // loop_footer
                  %s207 = sadd.s32 %s205, 1
                $region53: #{tpu_custom_call.1} parent=46 // loop_footer_branch
                  %204 = sbr.rel target = $region49
                $region54: #{tpu_custom_call.1} parent=46 // loop_exit
                  _
              $region47: #{tpu_custom_call.1} parent=31 // pred_fallthru
                _
            $region32: #{tpu_custom_call.1} parent=27 // pred_fallthru
              _
            // Predicated region
            $region33: #{tpu_custom_call.1} parent=27 // pred_check
              _
            $region34: #{tpu_custom_call.1} parent=27 // pred_check_branch
              %181 = sbr.rel (0) target = $region36
            $region35: #{tpu_custom_call.1} parent=27 // pred_region
              // While loop
              $region37: #{tpu_custom_call.1} parent=35 // loop_pre_header
                _
              $region38: #{tpu_custom_call.1} parent=35 // loop_header
                %s184 = sphi 0, %s186
                %p185 = scmp.ge.s32.totalorder %s184, %s168
                %s189 = sphi 0, %s196
                %s190 = sphi %s174, %s199
                %s191 = sphi %s166, %s200
              $region39: #{tpu_custom_call.1} parent=35 // loop_header_branch
                %188 = sbr.rel (%p185) target = $region43
              $region40: #{tpu_custom_call.1} parent=35 // loop_body
                %v192 = vld [vmem:[%s190] sm:$0x3]
                %193 = vst [vmem:[%s191] sm:$0x3] %v192
                %s194 = sadd.s32 1, %s189
                %p195 = scmp.ge.s32.totalorder %s194, %s168
                %s196 = scalar_select %p195, 0, %s194
                %s197 = smul.u32 %s196, 4
                %s198 = smul.u32 %s196, 2
                %s199 = scalar_lea.vmem %s174, %s197
                %s200 = scalar_lea.vmem %s166, %s198 [#allocation2]
              $region41: #{tpu_custom_call.1} parent=35 // loop_footer
                %s186 = sadd.s32 %s184, 1
              $region42: #{tpu_custom_call.1} parent=35 // loop_footer_branch
                %183 = sbr.rel target = $region38
              $region43: #{tpu_custom_call.1} parent=35 // loop_exit
                _
            $region36: #{tpu_custom_call.1} parent=27 // pred_fallthru
              _
          $region28: #{tpu_custom_call.1} parent=23 // pred_fallthru
            _
          %222 = vnop
        $region24: #{tpu_custom_call.1} parent=19 // pred_fallthru
          _
        // Predicated region
        $region55: #{tpu_custom_call.1} parent=19 // pred_check
          %p223 = pneg %p100
        $region56: #{tpu_custom_call.1} parent=19 // pred_check_branch
          %225 = sbr.rel (%p223) target = $region58
        $region57: #{tpu_custom_call.1} parent=19 // pred_region
          %s226 = sand.u32 %s90, 1
          %s227 = sand.u32 %s90, 1
          %s228 = smul.addr %s227, 8
          %s229 = scalar_lea.vmem [#allocation3], %s228
          %s230 = smul.u32 4, %s19
          %s231 = ssub.s32 1, %s230
          %s232 = smul.u32 32, %s231
          %p233 = scmp.ne.s32.totalorder 0, %s232
          %s234 = smul.addr %s230, 2
          %s235 = sadd.s32 %s20, %s234
          %s236 = smul.addr %s235, 2
          %s237 = scalar_lea.vmem %s2, %s236
          // Predicated region
          $region59: #{tpu_custom_call.1} parent=57 // pred_check
            %p238 = pneg %p233
          $region60: #{tpu_custom_call.1} parent=57 // pred_check_branch
            %240 = sbr.rel (%p238) target = $region62
          $region61: #{tpu_custom_call.1} parent=57 // pred_region
            // Predicated region
            $region63: #{tpu_custom_call.1} parent=61 // pred_check
              _
            $region64: #{tpu_custom_call.1} parent=61 // pred_check_branch
              %242 = sbr.rel target = $region66
            $region65: #{tpu_custom_call.1} parent=61 // pred_region
              // Predicated region
              $region78: #{tpu_custom_call.1} parent=65 // pred_check
                _
              $region79: #{tpu_custom_call.1} parent=65 // pred_check_branch
                %265 = sbr.rel (0) target = $region81
              $region80: #{tpu_custom_call.1} parent=65 // pred_region
                // While loop
                $region82: #{tpu_custom_call.1} parent=80 // loop_pre_header
                  _
                $region83: #{tpu_custom_call.1} parent=80 // loop_header
                  %s268 = sphi 0, %s270
                  %p269 = scmp.ge.s32.totalorder %s268, %s231
                  %s273 = sphi 0, %s280
                  %s274 = sphi %s237, %s283
                  %s275 = sphi %s229, %s284
                $region84: #{tpu_custom_call.1} parent=80 // loop_header_branch
                  %272 = sbr.rel (%p269) target = $region88
                $region85: #{tpu_custom_call.1} parent=80 // loop_body
                  %v276 = vld [vmem:[%s274] sm:$0x3]
                  %277 = vst [vmem:[%s275] sm:$0x3] %v276
                  %s278 = sadd.s32 1, %s273
                  %p279 = scmp.ge.s32.totalorder %s278, %s231
                  %s280 = scalar_select %p279, 0, %s278
                  %s281 = smul.u32 %s280, 4
                  %s282 = smul.u32 %s280, 2
                  %s283 = scalar_lea.vmem %s237, %s281
                  %s284 = scalar_lea.vmem %s229, %s282 [#allocation3]
                $region86: #{tpu_custom_call.1} parent=80 // loop_footer
                  %s270 = sadd.s32 %s268, 1
                $region87: #{tpu_custom_call.1} parent=80 // loop_footer_branch
                  %267 = sbr.rel target = $region83
                $region88: #{tpu_custom_call.1} parent=80 // loop_exit
                  _
              $region81: #{tpu_custom_call.1} parent=65 // pred_fallthru
                _
            $region66: #{tpu_custom_call.1} parent=61 // pred_fallthru
              _
            // Predicated region
            $region67: #{tpu_custom_call.1} parent=61 // pred_check
              _
            $region68: #{tpu_custom_call.1} parent=61 // pred_check_branch
              %244 = sbr.rel (0) target = $region70
            $region69: #{tpu_custom_call.1} parent=61 // pred_region
              // While loop
              $region71: #{tpu_custom_call.1} parent=69 // loop_pre_header
                _
              $region72: #{tpu_custom_call.1} parent=69 // loop_header
                %s247 = sphi 0, %s249
                %p248 = scmp.ge.s32.totalorder %s247, %s231
                %s252 = sphi 0, %s259
                %s253 = sphi %s237, %s262
                %s254 = sphi %s229, %s263
              $region73: #{tpu_custom_call.1} parent=69 // loop_header_branch
                %251 = sbr.rel (%p248) target = $region77
              $region74: #{tpu_custom_call.1} parent=69 // loop_body
                %v255 = vld [vmem:[%s253] sm:$0x3]
                %256 = vst [vmem:[%s254] sm:$0x3] %v255
                %s257 = sadd.s32 1, %s252
                %p258 = scmp.ge.s32.totalorder %s257, %s231
                %s259 = scalar_select %p258, 0, %s257
                %s260 = smul.u32 %s259, 4
                %s261 = smul.u32 %s259, 2
                %s262 = scalar_lea.vmem %s237, %s260
                %s263 = scalar_lea.vmem %s229, %s261 [#allocation3]
              $region75: #{tpu_custom_call.1} parent=69 // loop_footer
                %s249 = sadd.s32 %s247, 1
              $region76: #{tpu_custom_call.1} parent=69 // loop_footer_branch
                %246 = sbr.rel target = $region72
              $region77: #{tpu_custom_call.1} parent=69 // loop_exit
                _
            $region70: #{tpu_custom_call.1} parent=61 // pred_fallthru
              _
          $region62: #{tpu_custom_call.1} parent=57 // pred_fallthru
            _
          %285 = vnop
        $region58: #{tpu_custom_call.1} parent=19 // pred_fallthru
          _
      $region20: #{tpu_custom_call.1} parent=5 // pred_fallthru
        _
      %p286 = scmp.le.s32.totalorder 1, %s12
      %p287 = scmp.lt.s32.totalorder %s12, 3
      %p288 = pnand %p286, %p287
      %p289 = pneg %p288
      // Predicated region
      $region89: #{tpu_custom_call.1} parent=5 // pred_check
        _
      $region90: #{tpu_custom_call.1} parent=5 // pred_check_branch
        %291 = sbr.rel (%p288) target = $region92
      $region91: #{tpu_custom_call.1} parent=5 // pred_region
        %s292 = ssub.s32 %s12, 1
        %s293 = sand.u32 %s65, 1
        %s294 = sand.u32 %s65, 1
        %s295 = smul.addr %s294, 8
        %s296 = scalar_lea.vmem [#allocation2], %s295
        // Predicated region
        $region93: #{tpu_custom_call.1} parent=91 // pred_check
          %p297 = pneg %p78
        $region94: #{tpu_custom_call.1} parent=91 // pred_check_branch
          %299 = sbr.rel (%p297) target = $region96
        $region95: #{tpu_custom_call.1} parent=91 // pred_region
          _
        $region96: #{tpu_custom_call.1} parent=91 // pred_fallthru
          _
        %s300 = sand.u32 %s93, 1
        %s301 = sand.u32 %s93, 1
        %s302 = smul.addr %s301, 8
        %s303 = scalar_lea.vmem [#allocation3], %s302
        // Predicated region
        $region97: #{tpu_custom_call.1} parent=91 // pred_check
          %p304 = pneg %p106
        $region98: #{tpu_custom_call.1} parent=91 // pred_check_branch
          %306 = sbr.rel (%p304) target = $region100
        $region99: #{tpu_custom_call.1} parent=91 // pred_region
          _
        $region100: #{tpu_custom_call.1} parent=91 // pred_fallthru
          _
        %p307 = scmp.lt.s32.totalorder %s21, 0
        %s308 = scalar_select %p307, %s21, 0
        %s309 = smul.addr %s308, 8
        %s310 = scalar_lea.vmem %s0, %s309
        %p311 = pneg %p50
        %p312 = pneg %p47
        %s313 = sand.u32 %s65, 1
        %s314 = sand.u32 %s65, 1
        %s315 = smul.addr %s314, 8
        %s316 = scalar_lea.vmem [#allocation2], %s315
        %p317 = pneg %p78
        %p318 = pneg %p75
        %s319 = sand.u32 %s93, 1
        %s320 = sand.u32 %s93, 1
        %s321 = smul.addr %s320, 8
        %s322 = scalar_lea.vmem [#allocation3], %s321
        %p323 = pneg %p106
        %p324 = pneg %p103
        %p325 = pneg %p134
        %p326 = pneg %p131
        %s327 = sand.u32 %s121, 1
        %s328 = scalar_lea.sflag [#allocation5], %s327
        %s329 = sand.u32 %s121, 1
        %s330 = smul.addr %s329, 8
        %s331 = scalar_lea.vmem [#allocation4], %s330
        %p332 = scmp.lt.s32.totalorder %s21, 0
        %s333 = scalar_select %p332, %s21, 0
        %s334 = smul.addr %s333, 8
        %s335 = scalar_lea.vmem %s0, %s334
        %s336 = smul.u32 4, %s21
        %s337 = ssub.s32 1, %s336
        %s338 = smul.u32 32, %s337
        %s339 = smul.u32 4, %s21
        %s340 = ssub.s32 1, %s339
        %s341 = smul.u32 32, %s340
        %v342 = vld [vmem:[%s296] sm:$0xff]
        %v343 = vld [vmem:[%s303] sm:$0xff]
        %v344 = vld [vmem:[%s335] sm:$0xff]
        %s345 = smul.u32 %s22, 128
        %v346 = vlaneseq
        %v347 = vand.u32 %v346, 127
        %v348 = vstv %s345
        %v349 = vadd.s32 %v348, %v347
        %vm350 = vcmp.lt.s32.totalorder %v344, 8
        %v351 = vsel %vm350, %v344, 8
        %v352 = vmul.u32 %v351, 32
        %v353 = vlog2.pop %v342
        %v354 = vmul.f32 %v353, 0.6931472
        %v355 = vmax.f32 %v354, -100.0
        %v356 = vsub.f32 1.0, %v342
        %v357 = vlog2.pop %v356
        %v358 = vmul.f32 %v357, 0.6931472
        %v359 = vmax.f32 %v358, -100.0
        %v360 = vsub.f32 %v355, %v359
        %v361 = vmul.f32 %v343, %v360
        %v362 = vadd.f32 %v359, %v361
        %363 = vset.pattern.permute.xlu0 0
        %364 = vperm.xlu0 %363, %v352
        %v365 = vpop.permute.xlu0 %364
        %vm366 = vcmp.lt.s32.totalorder %v349, %v365
        %v367 = vsel %vm366, %v362, 0.0
        %368 = vadd.xlane.f32.xlu0 %v367
        %v369 = vpop.xlane.xlu0 %368
        %v370 = vrot.slane %v369, 4
        %v371 = vadd.f32 %v369, %v370
        %v372 = vrot.slane %v371, 2
        %v373 = vadd.f32 %v371, %v372
        %v374 = vrot.slane %v373, 1
        %v375 = vadd.f32 %v373, %v374
        %s376 = vtos %v375
        %s377 = ssub.f32 0.0, %s376
        %v378 = vlaneseq
        %v379 = vshrl.u32 %v378, 7
        %v380 = vadd.s32 %v379, %v347
        %vm381 = vcmp.eq.s32.totalorder %v380, 0
        %v382 = vstv %s377
        %v383 = vsel %vm381, %v382, 0.0
        %384 = vst [vmem:[%s331] sm:$0xff] %v383
        %s385 = sand.u32 %s121, 1
        %s386 = scalar_lea.sflag [#allocation5], %s385
        %s387 = sand.u32 %s121, 1
        %s388 = smul.addr %s387, 8
        %s389 = scalar_lea.vmem [#allocation4], %s388
        // Predicated region
        $region101: #{tpu_custom_call.1} parent=91 // pred_check
          %p390 = pneg %p131
        $region102: #{tpu_custom_call.1} parent=91 // pred_check_branch
          %392 = sbr.rel (%p390) target = $region104
        $region103: #{tpu_custom_call.1} parent=91 // pred_region
          %s394 = ssub.s32 128, 128
          %395 = vsyncadd %s386, %s394
          %s396 = smul.addr %s21, 2
          %s397 = sadd.s32 %s22, %s396
          %s398 = smul.addr %s397, 128
          %s399 = scalar_lea.hbm %s3, %s398
          %s401 = sshll.u32 %s389, 4
          %s402 = int_to_ptr.vmem [resolvable:$true] %s401
          %404 = dma.vmem_to_hbm [thread:$0]  %s402, 128, %s399, %s386
        $region104: #{tpu_custom_call.1} parent=91 // pred_fallthru
          _
      $region92: #{tpu_custom_call.1} parent=5 // pred_fallthru
        _
      %p405 = scmp.le.s32.totalorder 2, %s12
      // Predicated region
      $region105: #{tpu_custom_call.1} parent=5 // pred_check
        %p406 = pneg %p405
      $region106: #{tpu_custom_call.1} parent=5 // pred_check_branch
        %408 = sbr.rel (%p406) target = $region108
      $region107: #{tpu_custom_call.1} parent=5 // pred_region
        %s409 = ssub.s32 %s12, 2
        // Predicated region
        $region109: #{tpu_custom_call.1} parent=107 // pred_check
          %p410 = pneg %p137
        $region110: #{tpu_custom_call.1} parent=107 // pred_check_branch
          %412 = sbr.rel (%p410) target = $region112
        $region111: #{tpu_custom_call.1} parent=107 // pred_region
          %s413 = sand.u32 %s122, 1
          %s414 = scalar_lea.sflag [#allocation5], %s413
          %s415 = sand.u32 %s122, 1
          %s416 = smul.addr %s415, 8
          %s417 = scalar_lea.vmem [#allocation4], %s416
          %418 = dma.done %s414, 128
        $region112: #{tpu_custom_call.1} parent=107 // pred_fallthru
          _
      $region108: #{tpu_custom_call.1} parent=5 // pred_fallthru
        _
    $region6: #{tpu_custom_call.1} parent=1 // loop_footer
      %s16 = sadd.s32 1, %s12
    $region7: #{tpu_custom_call.1} parent=1 // loop_footer_branch
      %11 = sbr.rel target = $region3
    $region8: #{tpu_custom_call.1} parent=1 // loop_exit
      _
    %419 = vsyncpa [#allocation5], 1
    %s420 = scalar_lea.sflag [#allocation5], 1
    %421 = vsyncpa %s420, 1

</llo_original>
